<compile_context>
chip_gen: v7x
topology: tpu7x:2x2x1
jax: 0.10.0
libtpu: 0.0.40
codegen_flags: <defaults>
</compile_context>

<pallas_src>
import numpy as np
import jax
import jax.numpy as jnp
from jax.experimental import pallas as pl
from jax.experimental.pallas import tpu as pltpu

NEG_SLOPE = 0.01   # F.leaky_relu default negative_slope
BN_EPS = 1e-5      # BatchNorm1d default eps


def _round_up(v, m):
    return (v + m - 1) // m * m


def _cdiv(a, b):
    return -(-a // b)


def _fcdecoder_kernel(x_ref, w1_ref, b1_ref, w2_ref, b2_ref, w3_ref, b3_ref,
                      o_ref, h_ref):
    # Hidden activations are computed once per batch tile (first P tile) and
    # stay resident in VMEM scratch across the P ("arbitrary") grid axis.
    @pl.when(pl.program_id(1) == 0)
    def _():
        h = jnp.dot(x_ref[...], w1_ref[...],
                    preferred_element_type=jnp.float32) + b1_ref[...]
        h = jnp.maximum(h, NEG_SLOPE * h)          # leaky_relu (f32, 2 VALU ops)
        h = jnp.dot(h.astype(jnp.bfloat16), w2_ref[...],
                    preferred_element_type=jnp.float32) + b2_ref[...]
        h = jnp.maximum(h, NEG_SLOPE * h)
        h_ref[...] = h.astype(jnp.bfloat16)        # bf16 MXU operand

    # W3'/b3' carry the folded BN scale AND the sigmoid's (-0.5) prescale,
    # so sigmoid(0.5 * logits) == 1 / (1 + exp(z)).
    z = jnp.dot(h_ref[...], w3_ref[...],
                preferred_element_type=jnp.float32) + b3_ref[...]
    z = jnp.minimum(z, 30.0)                       # keep exp finite for approx rcp
    o_ref[...] = pl.reciprocal(1.0 + jnp.exp(z), approx=True).astype(o_ref.dtype)


def fcdecoder_forward(x, params, num_nodes):
    """Eval-mode FCDecoder.forward. Returns (conn_est, None)."""
    B, F = x.shape
    P = num_nodes * (num_nodes - 1) // 2
    (w1, b1, s1, t1, w2, b2, s2, t2, w3, b3) = params

    # ---- fold BatchNorm (eval) into the following linears; fold the sigmoid's
    #      0.5 prescale (with sign flip) into fc3 (host side, free) -----------
    w2f = w2 * s1.reshape(-1, 1)                   # diag(s1) @ W2
    b2f = b2 + t1 @ w2
    w3f = (w3 * s2.reshape(-1, 1)) * (-0.5)        # -0.5 * diag(s2) @ W3
    b3f = (b3 + t2 @ w3) * (-0.5)

    # ---- per-generation VMEM budget ------------------------------------------
    try:
        vmem_cap = int(pltpu.get_tpu_info().vmem_capacity_bytes)
    except Exception:
        vmem_cap = 64 << 20                        # conservative (v7x-sized)
    vmem_limit = max(min(vmem_cap - (16 << 20), 100 << 20), 32 << 20)

    # ---- tiling ---------------------------------------------------------------
    # Batch: one tile up to 512 rows so W3' (the dominant HBM stream) is read
    # exactly once; multiple of 16 for bf16 sublane packing.
    nb = max(1, _cdiv(B, 512))
    TB = _round_up(_cdiv(B, nb), 16)
    B_pad = nb * TB
    # P: lane-dense tiles, padding kept small (< n_tiles*128 dead columns).
    TP_target = 4096 if vmem_limit >= (96 << 20) else 2048
    P_min = _round_up(P, 128)
    np_t = max(1, _cdiv(P_min, TP_target))
    TP = _round_up(_cdiv(P_min, np_t), 128)
    P_pad = np_t * TP

    x_p = jnp.zeros((B_pad, F), jnp.float32).at[:B].set(x).astype(jnp.bfloat16)
    w3_p = jnp.zeros((w3f.shape[0], P_pad), jnp.float32).at[:, :P].set(w3f)
    b3_p = jnp.zeros((1, P_pad), jnp.float32).at[:, :P].set(b3f)

    w1b = w1.astype(jnp.bfloat16)
    w2b = w2f.astype(jnp.bfloat16)
    w3b = w3_p.astype(jnp.bfloat16)
    H1, H2 = w1b.shape[1], w2b.shape[1]            # 2F, 4F

    flops = 2 * B_pad * (F * H1 + H1 * H2 + H2 * P_pad)
    bytes_accessed = (x_p.size * 2 + w1b.size * 2 + w2b.size * 2
                      + nb * w3b.size * 2 + b3_p.size * 4 + B_pad * P_pad * 2)
    cost = pl.CostEstimate(flops=flops, transcendentals=B_pad * P_pad,
                           bytes_accessed=bytes_accessed)

    grid = (B_pad // TB, P_pad // TP)

    # TODO(synk): on v7x megacore, making the P axis the core-parallel axis
    # (and recomputing h per core) would halve the per-core W3' HBM stream.
    def _run(single_buffer_invariants):
        const_kw = ({"pipeline_mode": pl.Buffered(1)}
                    if single_buffer_invariants else {})
        in_specs = [
            pl.BlockSpec((TB, F), lambda i, j: (i, 0)),                  # x tile
            pl.BlockSpec(w1b.shape, lambda i, j: (0, 0), **const_kw),    # W1
            pl.BlockSpec(b1.shape, lambda i, j: (0, 0), **const_kw),     # b1
            pl.BlockSpec(w2b.shape, lambda i, j: (0, 0), **const_kw),    # W2'
            pl.BlockSpec(b2f.shape, lambda i, j: (0, 0), **const_kw),    # b2'
            pl.BlockSpec((w3b.shape[0], TP), lambda i, j: (0, j)),       # W3' tile
            pl.BlockSpec((1, TP), lambda i, j: (0, j)),                  # b3' tile
        ]
        return pl.pallas_call(
            _fcdecoder_kernel,
            out_shape=jax.ShapeDtypeStruct((B_pad, P_pad), jnp.bfloat16),
            grid=grid,
            in_specs=in_specs,
            out_specs=pl.BlockSpec((TB, TP), lambda i, j: (i, j)),
            scratch_shapes=[pltpu.VMEM((TB, H2), jnp.bfloat16)],
            compiler_params=pltpu.CompilerParams(
                dimension_semantics=("parallel", "arbitrary"),
                vmem_limit_bytes=vmem_limit),
            cost_estimate=cost,
        )(x_p, w1b, b1, w2b, b2f, w3b, b3_p)

    try:
        sig = _run(True)        # single-buffer the grid-invariant weights
    except Exception:
        sig = _run(False)       # fallback if Buffered(1) is unsupported

    sig = sig[:B, :P]

    # ---- glue: static symmetric gather into (B, N, N); diagonal = sigmoid(0) --
    iu, ju = np.triu_indices(num_nodes, k=1)
    tri = np.zeros((num_nodes, num_nodes), dtype=np.int32)
    tri[iu, ju] = np.arange(P, dtype=np.int32)
    tri[ju, iu] = np.arange(P, dtype=np.int32)
    idx = jnp.asarray(tri.reshape(-1))
    conn = jnp.take(sig, idx, axis=1).reshape(B, num_nodes, num_nodes)
    conn = conn.astype(jnp.float32)
    eye = jnp.eye(num_nodes, dtype=bool)
    conn = jnp.where(eye[None, :, :], jnp.float32(0.5), conn)
    return conn, None


def init_params(key, feature_channels, num_nodes):
    F = feature_channels
    P = num_nodes * (num_nodes - 1) // 2
    ks = jax.random.split(key, 14)

    def linear(kw, kb, fan_in, fan_out):
        bound = 1.0 / float(fan_in) ** 0.5
        w = jax.random.uniform(kw, (fan_in, fan_out), jnp.float32, -bound, bound)
        b = jax.random.uniform(kb, (1, fan_out), jnp.float32, -bound, bound)
        return w, b

    def bn_scale_shift(kg, kb, km, kv, dim):
        gamma = 1.0 + 0.1 * jax.random.normal(kg, (1, dim), jnp.float32)
        beta = 0.1 * jax.random.normal(kb, (1, dim), jnp.float32)
        mean = 0.1 * jax.random.normal(km, (1, dim), jnp.float32)
        var = jnp.abs(1.0 + 0.1 * jax.random.normal(kv, (1, dim), jnp.float32))
        scale = gamma / jnp.sqrt(var + BN_EPS)
        shift = beta - mean * scale
        return scale, shift

    w1, b1 = linear(ks[0], ks[1], F, 2 * F)
    w2, b2 = linear(ks[2], ks[3], 2 * F, 4 * F)
    w3, b3 = linear(ks[4], ks[5], 4 * F, P)
    s1, t1 = bn_scale_shift(ks[6], ks[7], ks[8], ks[9], 2 * F)
    s2, t2 = bn_scale_shift(ks[10], ks[11], ks[12], ks[13], 4 * F)
    return (w1, b1, s1, t1, w2, b2, s2, t2, w3, b3)


def _ref_forward_f32(x, params, num_nodes):
    """Pure-JAX f32 eval-mode reference (unfolded BN, exact sigmoid)."""
    (w1, b1, s1, t1, w2, b2, s2, t2, w3, b3) = params
    h = x @ w1 + b1
    h = jnp.where(h >= 0, h, NEG_SLOPE * h)
    h = h * s1 + t1
    h = h @ w2 + b2
    h = jnp.where(h >= 0, h, NEG_SLOPE * h)
    h = h * s2 + t2
    z = h @ w3 + b3
    B, N = x.shape[0], num_nodes
    iu, ju = np.triu_indices(N, 1)
    conn = jnp.zeros((B, N, N), jnp.float32)
    conn = conn.at[:, iu, ju].set(z)
    return jax.nn.sigmoid(0.5 * (conn + jnp.swapaxes(conn, 1, 2)))


if __name__ == "__main__":
    feature_channels = 32
    num_nodes = 16
    batch = 8

    key = jax.random.PRNGKey(0)
    kx, kp = jax.random.split(key)
    x = jax.random.normal(kx, (batch, feature_channels), jnp.float32)
    params = init_params(kp, feature_channels, num_nodes)

    conn_est, _ = fcdecoder_forward(x, params, num_nodes)
    conn_est = jax.block_until_ready(conn_est)

    assert conn_est.shape == (batch, num_nodes, num_nodes)
    # structural sanity: symmetric, diagonal exactly 0.5
    assert bool(jnp.allclose(conn_est, jnp.swapaxes(conn_est, 1, 2)))
    assert bool(jnp.allclose(jnp.diagonal(conn_est, axis1=1, axis2=2), 0.5))
    # numerical sanity vs f32 reference (bf16 matmuls/output + approx reciprocal)
    ref = _ref_forward_f32(x, params, num_nodes)
    assert bool(jnp.allclose(conn_est, ref, atol=3e-2)), float(
        jnp.max(jnp.abs(conn_est - ref)))
    print("KERNEL_OK")
</pallas_src>

<mosaic_0001>
module attributes {stable_mosaic.version = 11 : i64} {
  func.func @_fcdecoder_kernel(%arg0: i32, %arg1: i32, %arg2: memref<16x32xbf16, #tpu.memory_space<vmem>>, %arg3: memref<32x64xbf16, #tpu.memory_space<vmem>>, %arg4: memref<1x64xf32, #tpu.memory_space<vmem>>, %arg5: memref<64x128xbf16, #tpu.memory_space<vmem>>, %arg6: memref<1x128xf32, #tpu.memory_space<vmem>>, %arg7: memref<128x128xbf16, #tpu.memory_space<vmem>>, %arg8: memref<1x128xf32, #tpu.memory_space<vmem>>, %arg9: memref<16x128xbf16, #tpu.memory_space<vmem>>, %arg10: memref<16x128xbf16, #tpu.memory_space<vmem>>) attributes {dimension_semantics = [#tpu.dimension_semantics<parallel>, #tpu.dimension_semantics<arbitrary>], iteration_bounds = array<i64: 1, 1>, scalar_prefetch = 0 : i64, scratch_operands = 1 : i64, tpu.core_type = #tpu.core_type<tc>, window_params = [{transform_indices = @transform_0, window_bounds = array<i64: 16, 32>}, {pipeline_mode = #tpu.pipeline_mode<synchronous>, transform_indices = @transform_1, window_bounds = array<i64: 32, 64>}, {pipeline_mode = #tpu.pipeline_mode<synchronous>, transform_indices = @transform_2, window_bounds = array<i64: 1, 64>}, {pipeline_mode = #tpu.pipeline_mode<synchronous>, transform_indices = @transform_3, window_bounds = array<i64: 64, 128>}, {pipeline_mode = #tpu.pipeline_mode<synchronous>, transform_indices = @transform_4, window_bounds = array<i64: 1, 128>}, {transform_indices = @transform_5, window_bounds = array<i64: 128, 128>}, {transform_indices = @transform_6, window_bounds = array<i64: 1, 128>}, {transform_indices = @transform_7, window_bounds = array<i64: 16, 128>}]} {
    %c0_i32 = arith.constant 0 : i32
    %0 = arith.cmpi eq, %arg1, %c0_i32 : i32
    %1 = arith.extui %0 : i1 to i32
    %c0_i32_0 = arith.constant 0 : i32
    %2 = arith.cmpi ne, %1, %c0_i32_0 : i32
    scf.if %2 {
      %c0_10 = arith.constant 0 : index
      %c0_11 = arith.constant 0 : index
      %17 = vector.load %arg2[%c0_10, %c0_11] : memref<16x32xbf16, #tpu.memory_space<vmem>>, vector<16x32xbf16>
      %c0_12 = arith.constant 0 : index
      %c0_13 = arith.constant 0 : index
      %18 = vector.load %arg3[%c0_12, %c0_13] : memref<32x64xbf16, #tpu.memory_space<vmem>>, vector<32x64xbf16>
      %cst_14 = arith.constant dense<0.000000e+00> : vector<16x64xf32>
      %19 = tpu.matmul %17, %18, %cst_14 {dimension_numbers = #tpu.dot_dimension_numbers<[1], [0], [0], [1], [0, 0, 1, 1], [], []>} : vector<16x32xbf16>, vector<32x64xbf16>, vector<16x64xf32> -> vector<16x64xf32>
      %c0_15 = arith.constant 0 : index
      %c0_16 = arith.constant 0 : index
      %20 = vector.load %arg4[%c0_15, %c0_16] : memref<1x64xf32, #tpu.memory_space<vmem>>, vector<1x64xf32>
      %21 = vector.broadcast %20 : vector<1x64xf32> to vector<16x64xf32>
      %22 = arith.addf %19, %21 : vector<16x64xf32>
      %cst_17 = arith.constant 0.00999999977 : f32
      %23 = vector.broadcast %cst_17 : f32 to vector<16x64xf32>
      %24 = arith.mulf %23, %22 : vector<16x64xf32>
      %25 = arith.maximumf %22, %24 : vector<16x64xf32>
      %26 = arith.truncf %25 : vector<16x64xf32> to vector<16x64xbf16>
      %c0_18 = arith.constant 0 : index
      %c0_19 = arith.constant 0 : index
      %27 = vector.load %arg5[%c0_18, %c0_19] : memref<64x128xbf16, #tpu.memory_space<vmem>>, vector<64x128xbf16>
      %cst_20 = arith.constant dense<0.000000e+00> : vector<16x128xf32>
      %28 = tpu.matmul %26, %27, %cst_20 {dimension_numbers = #tpu.dot_dimension_numbers<[1], [0], [0], [1], [0, 0, 1, 1], [], []>} : vector<16x64xbf16>, vector<64x128xbf16>, vector<16x128xf32> -> vector<16x128xf32>
      %c0_21 = arith.constant 0 : index
      %c0_22 = arith.constant 0 : index
      %29 = vector.load %arg6[%c0_21, %c0_22] : memref<1x128xf32, #tpu.memory_space<vmem>>, vector<1x128xf32>
      %30 = vector.broadcast %29 : vector<1x128xf32> to vector<16x128xf32>
      %31 = arith.addf %28, %30 : vector<16x128xf32>
      %cst_23 = arith.constant 0.00999999977 : f32
      %32 = vector.broadcast %cst_23 : f32 to vector<16x128xf32>
      %33 = arith.mulf %32, %31 : vector<16x128xf32>
      %34 = arith.maximumf %31, %33 : vector<16x128xf32>
      %35 = arith.truncf %34 : vector<16x128xf32> to vector<16x128xbf16>
      %c0_24 = arith.constant 0 : index
      %c0_25 = arith.constant 0 : index
      %36 = vector.load %arg10[%c0_24, %c0_25] : memref<16x128xbf16, #tpu.memory_space<vmem>>, vector<16x128xbf16>
      tpu.vector_store %arg10[%c0_24, %c0_25], %35 {strides = array<i32>} : memref<16x128xbf16, #tpu.memory_space<vmem>>, vector<16x128xbf16>,
    } else {
    }
    %c0 = arith.constant 0 : index
    %c0_1 = arith.constant 0 : index
    %3 = vector.load %arg10[%c0, %c0_1] : memref<16x128xbf16, #tpu.memory_space<vmem>>, vector<16x128xbf16>
    %c0_2 = arith.constant 0 : index
    %c0_3 = arith.constant 0 : index
    %4 = vector.load %arg7[%c0_2, %c0_3] : memref<128x128xbf16, #tpu.memory_space<vmem>>, vector<128x128xbf16>
    %cst = arith.constant dense<0.000000e+00> : vector<16x128xf32>
    %5 = tpu.matmul %3, %4, %cst {dimension_numbers = #tpu.dot_dimension_numbers<[1], [0], [0], [1], [0, 0, 1, 1], [], []>} : vector<16x128xbf16>, vector<128x128xbf16>, vector<16x128xf32> -> vector<16x128xf32>
    %c0_4 = arith.constant 0 : index
    %c0_5 = arith.constant 0 : index
    %6 = vector.load %arg8[%c0_4, %c0_5] : memref<1x128xf32, #tpu.memory_space<vmem>>, vector<1x128xf32>
    %7 = vector.broadcast %6 : vector<1x128xf32> to vector<16x128xf32>
    %8 = arith.addf %5, %7 : vector<16x128xf32>
    %cst_6 = arith.constant 3.000000e+01 : f32
    %9 = vector.broadcast %cst_6 : f32 to vector<16x128xf32>
    %10 = arith.minimumf %8, %9 : vector<16x128xf32>
    %11 = math.exp %10 : vector<16x128xf32>
    %cst_7 = arith.constant 1.000000e+00 : f32
    %12 = vector.broadcast %cst_7 : f32 to vector<16x128xf32>
    %13 = arith.addf %12, %11 : vector<16x128xf32>
    %14 = tpu.reciprocal %13 {approx = true} : vector<16x128xf32> -> vector<16x128xf32>
    %15 = arith.truncf %14 : vector<16x128xf32> to vector<16x128xbf16>
    %c0_8 = arith.constant 0 : index
    %c0_9 = arith.constant 0 : index
    %16 = vector.load %arg9[%c0_8, %c0_9] : memref<16x128xbf16, #tpu.memory_space<vmem>>, vector<16x128xbf16>
    tpu.vector_store %arg9[%c0_8, %c0_9], %15 {strides = array<i32>} : memref<16x128xbf16, #tpu.memory_space<vmem>>, vector<16x128xbf16>,
    return
  }
  func.func @transform_0(%arg0: i32, %arg1: i32) -> (i32, i32) {
    %c0_i32 = arith.constant 0 : i32
    %c0_i32_0 = arith.constant 0 : i32
    return %arg0, %c0_i32 : i32, i32
  }
  func.func @transform_1(%arg0: i32, %arg1: i32) -> (i32, i32) {
    %c0_i32 = arith.constant 0 : i32
    %c0_i32_0 = arith.constant 0 : i32
    %c0_i32_1 = arith.constant 0 : i32
    return %c0_i32, %c0_i32_0 : i32, i32
  }
  func.func @transform_2(%arg0: i32, %arg1: i32) -> (i32, i32) {
    %c0_i32 = arith.constant 0 : i32
    %c0_i32_0 = arith.constant 0 : i32
    %c0_i32_1 = arith.constant 0 : i32
    return %c0_i32, %c0_i32_0 : i32, i32
  }
  func.func @transform_3(%arg0: i32, %arg1: i32) -> (i32, i32) {
    %c0_i32 = arith.constant 0 : i32
    %c0_i32_0 = arith.constant 0 : i32
    %c0_i32_1 = arith.constant 0 : i32
    return %c0_i32, %c0_i32_0 : i32, i32
  }
  func.func @transform_4(%arg0: i32, %arg1: i32) -> (i32, i32) {
    %c0_i32 = arith.constant 0 : i32
    %c0_i32_0 = arith.constant 0 : i32
    %c0_i32_1 = arith.constant 0 : i32
    return %c0_i32, %c0_i32_0 : i32, i32
  }
  func.func @transform_5(%arg0: i32, %arg1: i32) -> (i32, i32) {
    %c0_i32 = arith.constant 0 : i32
    %c0_i32_0 = arith.constant 0 : i32
    return %c0_i32, %arg1 : i32, i32
  }
  func.func @transform_6(%arg0: i32, %arg1: i32) -> (i32, i32) {
    %c0_i32 = arith.constant 0 : i32
    %c0_i32_0 = arith.constant 0 : i32
    return %c0_i32, %arg1 : i32, i32
  }
  func.func @transform_7(%arg0: i32, %arg1: i32) -> (i32, i32) {
    %c0_i32 = arith.constant 0 : i32
    return %arg0, %arg1 : i32, i32
  }
}

module attributes {stable_mosaic.version = 11 : i64} {
  func.func @_fcdecoder_kernel(%arg0: i32, %arg1: i32, %arg2: memref<16x32xbf16, #tpu.memory_space<vmem>>, %arg3: memref<32x64xbf16, #tpu.memory_space<vmem>>, %arg4: memref<1x64xf32, #tpu.memory_space<vmem>>, %arg5: memref<64x128xbf16, #tpu.memory_space<vmem>>, %arg6: memref<1x128xf32, #tpu.memory_space<vmem>>, %arg7: memref<128x128xbf16, #tpu.memory_space<vmem>>, %arg8: memref<1x128xf32, #tpu.memory_space<vmem>>, %arg9: memref<16x128xbf16, #tpu.memory_space<vmem>>, %arg10: memref<16x128xbf16, #tpu.memory_space<vmem>>) attributes {dimension_semantics = [#tpu.dimension_semantics<parallel>, #tpu.dimension_semantics<arbitrary>], iteration_bounds = array<i64: 1, 1>, scalar_prefetch = 0 : i64, scratch_operands = 1 : i64, tpu.core_type = #tpu.core_type<tc>, window_params = [{transform_indices = @transform_0, window_bounds = array<i64: 16, 32>}, {pipeline_mode = #tpu.pipeline_mode<synchronous>, transform_indices = @transform_1, window_bounds = array<i64: 32, 64>}, {pipeline_mode = #tpu.pipeline_mode<synchronous>, transform_indices = @transform_2, window_bounds = array<i64: 1, 64>}, {pipeline_mode = #tpu.pipeline_mode<synchronous>, transform_indices = @transform_3, window_bounds = array<i64: 64, 128>}, {pipeline_mode = #tpu.pipeline_mode<synchronous>, transform_indices = @transform_4, window_bounds = array<i64: 1, 128>}, {transform_indices = @transform_5, window_bounds = array<i64: 128, 128>}, {transform_indices = @transform_6, window_bounds = array<i64: 1, 128>}, {transform_indices = @transform_7, window_bounds = array<i64: 16, 128>}]} {
    %c0_i32 = arith.constant 0 : i32
    %0 = arith.cmpi eq, %arg1, %c0_i32 : i32
    %1 = arith.extui %0 : i1 to i32
    %c0_i32_0 = arith.constant 0 : i32
    %2 = arith.cmpi ne, %1, %c0_i32_0 : i32
    scf.if %2 {
      %c0_10 = arith.constant 0 : index
      %c0_11 = arith.constant 0 : index
      %17 = vector.load %arg2[%c0_10, %c0_11] : memref<16x32xbf16, #tpu.memory_space<vmem>>, vector<16x32xbf16>
      %c0_12 = arith.constant 0 : index
      %c0_13 = arith.constant 0 : index
      %18 = vector.load %arg3[%c0_12, %c0_13] : memref<32x64xbf16, #tpu.memory_space<vmem>>, vector<32x64xbf16>
      %cst_14 = arith.constant dense<0.000000e+00> : vector<16x64xf32>
      %19 = tpu.matmul %17, %18, %cst_14 {dimension_numbers = #tpu.dot_dimension_numbers<[1], [0], [0], [1], [0, 0, 1, 1], [], []>} : vector<16x32xbf16>, vector<32x64xbf16>, vector<16x64xf32> -> vector<16x64xf32>
      %c0_15 = arith.constant 0 : index
      %c0_16 = arith.constant 0 : index
      %20 = vector.load %arg4[%c0_15, %c0_16] : memref<1x64xf32, #tpu.memory_space<vmem>>, vector<1x64xf32>
      %21 = vector.broadcast %20 : vector<1x64xf32> to vector<16x64xf32>
      %22 = arith.addf %19, %21 : vector<16x64xf32>
      %cst_17 = arith.constant 0.00999999977 : f32
      %23 = vector.broadcast %cst_17 : f32 to vector<16x64xf32>
      %24 = arith.mulf %23, %22 : vector<16x64xf32>
      %25 = arith.maximumf %22, %24 : vector<16x64xf32>
      %26 = arith.truncf %25 : vector<16x64xf32> to vector<16x64xbf16>
      %c0_18 = arith.constant 0 : index
      %c0_19 = arith.constant 0 : index
      %27 = vector.load %arg5[%c0_18, %c0_19] : memref<64x128xbf16, #tpu.memory_space<vmem>>, vector<64x128xbf16>
      %cst_20 = arith.constant dense<0.000000e+00> : vector<16x128xf32>
      %28 = tpu.matmul %26, %27, %cst_20 {dimension_numbers = #tpu.dot_dimension_numbers<[1], [0], [0], [1], [0, 0, 1, 1], [], []>} : vector<16x64xbf16>, vector<64x128xbf16>, vector<16x128xf32> -> vector<16x128xf32>
      %c0_21 = arith.constant 0 : index
      %c0_22 = arith.constant 0 : index
      %29 = vector.load %arg6[%c0_21, %c0_22] : memref<1x128xf32, #tpu.memory_space<vmem>>, vector<1x128xf32>
      %30 = vector.broadcast %29 : vector<1x128xf32> to vector<16x128xf32>
      %31 = arith.addf %28, %30 : vector<16x128xf32>
      %cst_23 = arith.constant 0.00999999977 : f32
      %32 = vector.broadcast %cst_23 : f32 to vector<16x128xf32>
      %33 = arith.mulf %32, %31 : vector<16x128xf32>
      %34 = arith.maximumf %31, %33 : vector<16x128xf32>
      %35 = arith.truncf %34 : vector<16x128xf32> to vector<16x128xbf16>
      %c0_24 = arith.constant 0 : index
      %c0_25 = arith.constant 0 : index
      %36 = vector.load %arg10[%c0_24, %c0_25] : memref<16x128xbf16, #tpu.memory_space<vmem>>, vector<16x128xbf16>
      tpu.vector_store %arg10[%c0_24, %c0_25], %35 {strides = array<i32>} : memref<16x128xbf16, #tpu.memory_space<vmem>>, vector<16x128xbf16>,
    } else {
    }
    %c0 = arith.constant 0 : index
    %c0_1 = arith.constant 0 : index
    %3 = vector.load %arg10[%c0, %c0_1] : memref<16x128xbf16, #tpu.memory_space<vmem>>, vector<16x128xbf16>
    %c0_2 = arith.constant 0 : index
    %c0_3 = arith.constant 0 : index
    %4 = vector.load %arg7[%c0_2, %c0_3] : memref<128x128xbf16, #tpu.memory_space<vmem>>, vector<128x128xbf16>
    %cst = arith.constant dense<0.000000e+00> : vector<16x128xf32>
    %5 = tpu.matmul %3, %4, %cst {dimension_numbers = #tpu.dot_dimension_numbers<[1], [0], [0], [1], [0, 0, 1, 1], [], []>} : vector<16x128xbf16>, vector<128x128xbf16>, vector<16x128xf32> -> vector<16x128xf32>
    %c0_4 = arith.constant 0 : index
    %c0_5 = arith.constant 0 : index
    %6 = vector.load %arg8[%c0_4, %c0_5] : memref<1x128xf32, #tpu.memory_space<vmem>>, vector<1x128xf32>
    %7 = vector.broadcast %6 : vector<1x128xf32> to vector<16x128xf32>
    %8 = arith.addf %5, %7 : vector<16x128xf32>
    %cst_6 = arith.constant 3.000000e+01 : f32
    %9 = vector.broadcast %cst_6 : f32 to vector<16x128xf32>
    %10 = arith.minimumf %8, %9 : vector<16x128xf32>
    %11 = math.exp %10 : vector<16x128xf32>
    %cst_7 = arith.constant 1.000000e+00 : f32
    %12 = vector.broadcast %cst_7 : f32 to vector<16x128xf32>
    %13 = arith.addf %12, %11 : vector<16x128xf32>
    %14 = tpu.reciprocal %13 {approx = true} : vector<16x128xf32> -> vector<16x128xf32>
    %15 = arith.truncf %14 : vector<16x128xf32> to vector<16x128xbf16>
    %c0_8 = arith.constant 0 : index
    %c0_9 = arith.constant 0 : index
    %16 = vector.load %arg9[%c0_8, %c0_9] : memref<16x128xbf16, #tpu.memory_space<vmem>>, vector<16x128xbf16>
    tpu.vector_store %arg9[%c0_8, %c0_9], %15 {strides = array<i32>} : memref<16x128xbf16, #tpu.memory_space<vmem>>, vector<16x128xbf16>,
    return
  }
  func.func @transform_0(%arg0: i32, %arg1: i32) -> (i32, i32) {
    %c0_i32 = arith.constant 0 : i32
    %c0_i32_0 = arith.constant 0 : i32
    return %arg0, %c0_i32 : i32, i32
  }
  func.func @transform_1(%arg0: i32, %arg1: i32) -> (i32, i32) {
    %c0_i32 = arith.constant 0 : i32
    %c0_i32_0 = arith.constant 0 : i32
    %c0_i32_1 = arith.constant 0 : i32
    return %c0_i32, %c0_i32_0 : i32, i32
  }
  func.func @transform_2(%arg0: i32, %arg1: i32) -> (i32, i32) {
    %c0_i32 = arith.constant 0 : i32
    %c0_i32_0 = arith.constant 0 : i32
    %c0_i32_1 = arith.constant 0 : i32
    return %c0_i32, %c0_i32_0 : i32, i32
  }
  func.func @transform_3(%arg0: i32, %arg1: i32) -> (i32, i32) {
    %c0_i32 = arith.constant 0 : i32
    %c0_i32_0 = arith.constant 0 : i32
    %c0_i32_1 = arith.constant 0 : i32
    return %c0_i32, %c0_i32_0 : i32, i32
  }
  func.func @transform_4(%arg0: i32, %arg1: i32) -> (i32, i32) {
    %c0_i32 = arith.constant 0 : i32
    %c0_i32_0 = arith.constant 0 : i32
    %c0_i32_1 = arith.constant 0 : i32
    return %c0_i32, %c0_i32_0 : i32, i32
  }
  func.func @transform_5(%arg0: i32, %arg1: i32) -> (i32, i32) {
    %c0_i32 = arith.constant 0 : i32
    %c0_i32_0 = arith.constant 0 : i32
    return %c0_i32, %arg1 : i32, i32
  }
  func.func @transform_6(%arg0: i32, %arg1: i32) -> (i32, i32) {
    %c0_i32 = arith.constant 0 : i32
    %c0_i32_0 = arith.constant 0 : i32
    return %c0_i32, %arg1 : i32, i32
  }
  func.func @transform_7(%arg0: i32, %arg1: i32) -> (i32, i32) {
    %c0_i32 = arith.constant 0 : i32
    return %arg0, %arg1 : i32, i32
  }
}

</mosaic_0001>

<llo_original>
// kernel: tpu_custom_call.1
$region0: #{tpu_custom_call.1}
  #allocation0 [shape = 'u32[]', space=smem, size = 0x4, offset = 0x4, fixed_abs, tag = 'smem constant byte address 0x4 - core index']
  #allocation1 [shape = 'u32[144,128]{1,0:T(1,128)}', space=vmem, size = 0x12000, scoped, tag = 'internal scratch']
  #allocation2 [shape = 'bf16[16,128]{1,0:T(16,128)(2,1)}', space=vmem, size = 0x1000, scoped, tag = 'scratch operand']
  %s0 = inlined_call_operand.hbm [shape: bf16[16,32], index: 0, kind: input, shape index: {}]
  %s1 = inlined_call_operand.hbm [shape: bf16[32,64], index: 1, kind: input, shape index: {}]
  %s2 = inlined_call_operand.vmem [shape: f32[1,64], index: 2, kind: input, shape index: {}]
  %s3 = inlined_call_operand.hbm [shape: bf16[64,128], index: 3, kind: input, shape index: {}]
  %s4 = inlined_call_operand.vmem [shape: f32[1,128], index: 4, kind: input, shape index: {}]
  %s5 = inlined_call_operand.hbm [shape: bf16[128,128], index: 5, kind: input, shape index: {}]
  %s6 = inlined_call_operand.vmem [shape: f32[1,128], index: 6, kind: input, shape index: {}]
  %s7 = inlined_call_operand.hbm [shape: bf16[16,128], index: 7, kind: output, shape index: {}]
  %s8 = sld [smem:[#allocation0]]
  $region58: #{tpu_custom_call.1} parent=0
    _
  %s10 = ssub.s32 1, %s8
  %s11 = scalar_select 0, %s10, %s8
  $region1: #{tpu_custom_call.1} parent=0
    #allocation3 [shape = 'u8[4096]{0}', space=vmem, size = 0x1000, scoped, tag = 'input window, operand 0, single buffered']
    #allocation4 [shape = 's32[1]{0}', space=sflag, size = 0x4, scoped, tag = 'scoped memory for tpu_custom_call.1']
    #allocation5 [shape = 's32[1]{0}', space=sflag, size = 0x4, scoped, tag = 'scoped memory for tpu_custom_call.1']
    #allocation6 [shape = 'u8[8192]{0}', space=vmem, size = 0x2000, scoped, tag = 'input window, operand 1, single buffered']
    #allocation7 [shape = 's32[1]{0}', space=sflag, size = 0x4, scoped, tag = 'scoped memory for tpu_custom_call.1']
    #allocation8 [shape = 'u8[16384]{0}', space=vmem, size = 0x4000, scoped, tag = 'input window, operand 3, single buffered']
    #allocation9 [shape = 'u8[32768]{0}', space=vmem, size = 0x8000, scoped, tag = 'input window, operand 5, single buffered']
    #allocation10 [shape = 's32[1]{0}', space=sflag, size = 0x4, scoped, tag = 'scoped memory for tpu_custom_call.1']
    #allocation11 [shape = 'u8[4096]{0}', space=vmem, size = 0x1000, scoped, tag = 'output window, operand 0, single buffered']
    %12 = vsyncpa [#allocation4], 0
    %13 = vsyncpa [#allocation7], 0
    %14 = vsyncpa [#allocation10], 0
    %15 = vsyncpa [#allocation5], 0
    // Predicated region
    $region2: #{tpu_custom_call.1} parent=1 // pred_check
      _
    $region3: #{tpu_custom_call.1} parent=1 // pred_check_branch
      %17 = sbr.rel (0) target = $region5
    $region4: #{tpu_custom_call.1} parent=1 // pred_region
      %s19 = ssub.s32 128, 128
      %20 = vsyncadd [#allocation4], %s19
      %s21 = sshll.u32 [#allocation3], 4
      %s22 = int_to_ptr.vmem [resolvable:$true] %s21
      %27 = dma.hbm_to_vmem [thread:$0]  %s0, 128, %s22, [#allocation4], 64, 64, 4
    $region5: #{tpu_custom_call.1} parent=1 // pred_fallthru
      _
    // Predicated region
    $region6: #{tpu_custom_call.1} parent=1 // pred_check
      _
    $region7: #{tpu_custom_call.1} parent=1 // pred_check_branch
      %29 = sbr.rel (0) target = $region9
    $region8: #{tpu_custom_call.1} parent=1 // pred_region
      %s31 = ssub.s32 256, 256
      %32 = vsyncadd [#allocation7], %s31
      %s33 = sshll.u32 [#allocation6], 4
      %s34 = int_to_ptr.vmem [resolvable:$true] %s33
      %39 = dma.hbm_to_vmem [thread:$0]  %s1, 256, %s34, [#allocation7], 64, 64, 4
    $region9: #{tpu_custom_call.1} parent=1 // pred_fallthru
      _
    // Predicated region
    $region10: #{tpu_custom_call.1} parent=1 // pred_check
      _
    $region11: #{tpu_custom_call.1} parent=1 // pred_check_branch
      %41 = sbr.rel (0) target = $region13
    $region12: #{tpu_custom_call.1} parent=1 // pred_region
      _
    $region13: #{tpu_custom_call.1} parent=1 // pred_fallthru
      _
    // Predicated region
    $region14: #{tpu_custom_call.1} parent=1 // pred_check
      _
    $region15: #{tpu_custom_call.1} parent=1 // pred_check_branch
      %43 = sbr.rel (0) target = $region17
    $region16: #{tpu_custom_call.1} parent=1 // pred_region
      %s45 = ssub.s32 512, 512
      %46 = vsyncadd [#allocation7], %s45
      %s47 = sshll.u32 [#allocation8], 4
      %s48 = int_to_ptr.vmem [resolvable:$true] %s47
      %53 = dma.hbm_to_vmem [thread:$0]  %s3, 512, %s48, [#allocation7], 64, 64, 4
    $region17: #{tpu_custom_call.1} parent=1 // pred_fallthru
      _
    // Predicated region
    $region18: #{tpu_custom_call.1} parent=1 // pred_check
      _
    $region19: #{tpu_custom_call.1} parent=1 // pred_check_branch
      %55 = sbr.rel (0) target = $region21
    $region20: #{tpu_custom_call.1} parent=1 // pred_region
      _
    $region21: #{tpu_custom_call.1} parent=1 // pred_fallthru
      _
    // Predicated region
    $region22: #{tpu_custom_call.1} parent=1 // pred_check
      _
    $region23: #{tpu_custom_call.1} parent=1 // pred_check_branch
      %57 = sbr.rel (0) target = $region25
    $region24: #{tpu_custom_call.1} parent=1 // pred_region
      %s59 = ssub.s32 1024, 1024
      %60 = vsyncadd [#allocation10], %s59
      %s61 = sshll.u32 [#allocation9], 4
      %s62 = int_to_ptr.vmem [resolvable:$true] %s61
      %67 = dma.hbm_to_vmem [thread:$0]  %s5, 1024, %s62, [#allocation10], 64, 64, 4
    $region25: #{tpu_custom_call.1} parent=1 // pred_fallthru
      _
    // Predicated region
    $region26: #{tpu_custom_call.1} parent=1 // pred_check
      _
    $region27: #{tpu_custom_call.1} parent=1 // pred_check_branch
      %69 = sbr.rel (0) target = $region29
    $region28: #{tpu_custom_call.1} parent=1 // pred_region
      _
    $region29: #{tpu_custom_call.1} parent=1 // pred_fallthru
      _
    // Predicated region
    $region30: #{tpu_custom_call.1} parent=1 // pred_check
      _
    $region31: #{tpu_custom_call.1} parent=1 // pred_check_branch
      %71 = sbr.rel (0) target = $region33
    $region32: #{tpu_custom_call.1} parent=1 // pred_region
      %72 = dma.done [#allocation4], 128
    $region33: #{tpu_custom_call.1} parent=1 // pred_fallthru
      _
    // Predicated region
    $region34: #{tpu_custom_call.1} parent=1 // pred_check
      _
    $region35: #{tpu_custom_call.1} parent=1 // pred_check_branch
      %74 = sbr.rel (0) target = $region37
    $region36: #{tpu_custom_call.1} parent=1 // pred_region
      %75 = dma.done [#allocation7], 256
    $region37: #{tpu_custom_call.1} parent=1 // pred_fallthru
      _
    // Predicated region
    $region38: #{tpu_custom_call.1} parent=1 // pred_check
      _
    $region39: #{tpu_custom_call.1} parent=1 // pred_check_branch
      %77 = sbr.rel (0) target = $region41
    $region40: #{tpu_custom_call.1} parent=1 // pred_region
      %78 = dma.done [#allocation7], 512
    $region41: #{tpu_custom_call.1} parent=1 // pred_fallthru
      _
    // Predicated region
    $region42: #{tpu_custom_call.1} parent=1 // pred_check
      _
    $region43: #{tpu_custom_call.1} parent=1 // pred_check_branch
      %80 = sbr.rel (0) target = $region45
    $region44: #{tpu_custom_call.1} parent=1 // pred_region
      %81 = dma.done [#allocation10], 1024
    $region45: #{tpu_custom_call.1} parent=1 // pred_fallthru
      _
    %p83 = scmp.eq.s32.totalorder 0, 0
    // Predicated region
    $region46: #{tpu_custom_call.1} parent=1 // pred_check
      %p84 = pneg %p83
    $region47: #{tpu_custom_call.1} parent=1 // pred_check_branch
      %86 = sbr.rel (%p84) target = $region49
    $region48: #{tpu_custom_call.1} parent=1 // pred_region
      %v87 = vld [vmem:[#allocation3] sm:$0xf]
      %v88 = vld [vmem:[#allocation3 + $0x4] sm:$0xf]
      %v89 = vld [vmem:[#allocation6] sm:$0xf]
      %v90 = vld [vmem:[#allocation6 + $0x4] sm:$0xf]
      %v91 = vld [vmem:[#allocation6 + $0x8] sm:$0xf]
      %v92 = vld [vmem:[#allocation6 + $0xc] sm:$0xf]
      %v93 = vld [vmem:[%s2] sm:$0x1]
      %v95 = vlaneseq
      %v96 = vshrl.u32 %v95, 7
      %v97 = vsub.s32 0, %v96
      %v98 = vrot.slane %v93, %v97
      %v102 = vunpack.c.l.b16 %v87
      %v103 = vunpack.c.l.b16 %v88
      %v104 = vpack.c.b16 %v103, %v102
      %v109 = vunpack.c.l.b16 %v89
      %v110 = vunpack.c.l.b16 %v90
      %v111 = vunpack.c.l.b16 %v91
      %v112 = vunpack.c.l.b16 %v92
      %v113 = vpack.c.b16 %v110, %v109
      %v114 = vpack.c.b16 %v112, %v111
      %vm117 = vcmask 261120
      %v119 = vsel %vm117, %v104, 0
      %121 = vmatprep.subr.bf16.mxu0 0
      %122 = vmatpush1.bf16.msra.mxu0 %v113
      %123 = vmatprep.subr.bf16.mxu0 0
      %124 = vmatpush1.bf16.msra.mxu0 %v114
      %125 = vmatprep.subr.bf16.mxu0 0
      %126 = vmatpush1.bf16.msra.mxu0 0
      %127 = vmatprep.subr.bf16.mxu0 0
      %128 = vmatpush1.bf16.msra.mxu0 0
      %129 = vmatprep.subr.bf16.mxu0 0
      %130 = vmatpush1.bf16.msra.mxu0 0
      %131 = vmatprep.subr.bf16.mxu0 0
      %132 = vmatpush1.bf16.msra.mxu0 0
      %133 = vmatprep.subr.bf16.mxu0 0
      %134 = vmatpush1.bf16.msra.mxu0 0
      %135 = vmatprep.subr.bf16.mxu0 0
      %136 = vmatpush1.bf16.msra.mxu0 0
      %137 = vmatprep.subr.bf16.mxu0 0
      %138 = vmatpush1.bf16.msra.mxu0 0
      %139 = vmatprep.subr.bf16.mxu0 0
      %140 = vmatpush1.bf16.msra.mxu0 0
      %141 = vmatprep.subr.bf16.mxu0 0
      %142 = vmatpush1.bf16.msra.mxu0 0
      %143 = vmatprep.subr.bf16.mxu0 0
      %144 = vmatpush1.bf16.msra.mxu0 0
      %145 = vmatprep.subr.bf16.mxu0 0
      %146 = vmatpush1.bf16.msra.mxu0 0
      %147 = vmatprep.subr.bf16.mxu0 0
      %148 = vmatpush1.bf16.msra.mxu0 0
      %149 = vmatprep.subr.bf16.mxu0 0
      %150 = vmatpush1.bf16.msra.mxu0 0
      %151 = vmatprep.subr.bf16.mxu0 0
      %152 = vmatpush1.bf16.msra.mxu0 0
      %153 = vmatprep.mubr.bf16.mxu0 0
      %154 = vmatmul.mubr.bf16.gmra.mrb[0].mxu0 %v119
      %v155 = vpop.f32.mrb[0].mxu0
      %v156 = vadd.f32 %v98, %v155
      %v157 = vpop.f32.mrb[0].mxu0
      %v158 = vpop.f32.mrb[0].mxu0
      %v159 = vadd.f32 %v98, %v158
      %v160 = vpop.f32.mrb[0].mxu0
      %161 = vdwg.mxu0
      %v162 = vmul.f32 %v156, 0.01
      %v163 = vmul.f32 %v159, 0.01
      %v164 = vmax.f32 %v156, %v162
      %v165 = vmax.f32 %v159, %v163
      %v166 = vpack.c.bf16 %v165, %v164
      %v167 = vld [vmem:[#allocation8] sm:$0xf]
      %v168 = vld [vmem:[#allocation8 + $0x4] sm:$0xf]
      %v169 = vld [vmem:[#allocation8 + $0x8] sm:$0xf]
      %v170 = vld [vmem:[#allocation8 + $0xc] sm:$0xf]
      %v171 = vld [vmem:[#allocation8 + $0x10] sm:$0xf]
      %v172 = vld [vmem:[#allocation8 + $0x14] sm:$0xf]
      %v173 = vld [vmem:[#allocation8 + $0x18] sm:$0xf]
      %v174 = vld [vmem:[#allocation8 + $0x1c] sm:$0xf]
      %v175 = vld [vmem:[%s4] sm:$0x1]
      %v177 = vlaneseq
      %v178 = vshrl.u32 %v177, 7
      %v179 = vsub.s32 0, %v178
      %v180 = vrot.slane %v175, %v179
      %v190 = vunpack.c.l.b16 %v167
      %v191 = vunpack.c.l.b16 %v168
      %v192 = vunpack.c.l.b16 %v169
      %v193 = vunpack.c.l.b16 %v170
      %v194 = vunpack.c.l.b16 %v171
      %v195 = vunpack.c.l.b16 %v172
      %v196 = vunpack.c.l.b16 %v173
      %v197 = vunpack.c.l.b16 %v174
      %v198 = vpack.c.b16 %v191, %v190
      %v199 = vpack.c.b16 %v193, %v192
      %v200 = vpack.c.b16 %v195, %v194
      %v201 = vpack.c.b16 %v197, %v196
      %vm206 = vcmask 523264
      %v208 = vsel %vm206, %v166, 0
      %210 = vmatprep.subr.bf16.mxu0 0
      %211 = vmatpush1.bf16.msra.mxu0 %v198
      %212 = vmatprep.subr.bf16.mxu0 0
      %213 = vmatpush1.bf16.msra.mxu0 %v199
      %214 = vmatprep.subr.bf16.mxu0 0
      %215 = vmatpush1.bf16.msra.mxu0 %v200
      %216 = vmatprep.subr.bf16.mxu0 0
      %217 = vmatpush1.bf16.msra.mxu0 %v201
      %218 = vmatprep.subr.bf16.mxu0 0
      %219 = vmatpush1.bf16.msra.mxu0 0
      %220 = vmatprep.subr.bf16.mxu0 0
      %221 = vmatpush1.bf16.msra.mxu0 0
      %222 = vmatprep.subr.bf16.mxu0 0
      %223 = vmatpush1.bf16.msra.mxu0 0
      %224 = vmatprep.subr.bf16.mxu0 0
      %225 = vmatpush1.bf16.msra.mxu0 0
      %226 = vmatprep.subr.bf16.mxu0 0
      %227 = vmatpush1.bf16.msra.mxu0 0
      %228 = vmatprep.subr.bf16.mxu0 0
      %229 = vmatpush1.bf16.msra.mxu0 0
      %230 = vmatprep.subr.bf16.mxu0 0
      %231 = vmatpush1.bf16.msra.mxu0 0
      %232 = vmatprep.subr.bf16.mxu0 0
      %233 = vmatpush1.bf16.msra.mxu0 0
      %234 = vmatprep.subr.bf16.mxu0 0
      %235 = vmatpush1.bf16.msra.mxu0 0
      %236 = vmatprep.subr.bf16.mxu0 0
      %237 = vmatpush1.bf16.msra.mxu0 0
      %238 = vmatprep.subr.bf16.mxu0 0
      %239 = vmatpush1.bf16.msra.mxu0 0
      %240 = vmatprep.subr.bf16.mxu0 0
      %241 = vmatpush1.bf16.msra.mxu0 0
      %242 = vmatprep.mubr.bf16.mxu0 0
      %243 = vmatmul.mubr.bf16.gmra.mrb[0].mxu0 %v208
      %v244 = vpop.f32.mrb[0].mxu0
      %v245 = vadd.f32 %v180, %v244
      %v246 = vpop.f32.mrb[0].mxu0
      %v247 = vpop.f32.mrb[0].mxu0
      %v248 = vadd.f32 %v180, %v247
      %v249 = vpop.f32.mrb[0].mxu0
      %250 = vdwg.mxu0
      %v251 = vmul.f32 %v245, 0.01
      %v252 = vmul.f32 %v248, 0.01
      %v253 = vmax.f32 %v245, %v251
      %v254 = vmax.f32 %v248, %v252
      %v255 = vpack.c.bf16 %v254, %v253
      %256 = vst [vmem:[#allocation2] sm:$0xff] %v255
    $region49: #{tpu_custom_call.1} parent=1 // pred_fallthru
      _
    %v257 = vld [vmem:[#allocation2] sm:$0xff]
    %v258 = vld [vmem:[#allocation9] sm:$0xf]
    %v259 = vld [vmem:[#allocation9 + $0x4] sm:$0xf]
    %v260 = vld [vmem:[#allocation9 + $0x8] sm:$0xf]
    %v261 = vld [vmem:[#allocation9 + $0xc] sm:$0xf]
    %v262 = vld [vmem:[#allocation9 + $0x10] sm:$0xf]
    %v263 = vld [vmem:[#allocation9 + $0x14] sm:$0xf]
    %v264 = vld [vmem:[#allocation9 + $0x18] sm:$0xf]
    %v265 = vld [vmem:[#allocation9 + $0x1c] sm:$0xf]
    %v266 = vld [vmem:[#allocation9 + $0x20] sm:$0xf]
    %v267 = vld [vmem:[#allocation9 + $0x24] sm:$0xf]
    %v268 = vld [vmem:[#allocation9 + $0x28] sm:$0xf]
    %v269 = vld [vmem:[#allocation9 + $0x2c] sm:$0xf]
    %v270 = vld [vmem:[#allocation9 + $0x30] sm:$0xf]
    %v271 = vld [vmem:[#allocation9 + $0x34] sm:$0xf]
    %v272 = vld [vmem:[#allocation9 + $0x38] sm:$0xf]
    %v273 = vld [vmem:[#allocation9 + $0x3c] sm:$0xf]
    %v274 = vld [vmem:[%s6] sm:$0x1]
    %v276 = vlaneseq
    %v277 = vshrl.u32 %v276, 7
    %v278 = vsub.s32 0, %v277
    %v279 = vrot.slane %v274, %v278
    %v297 = vunpack.c.l.b16 %v258
    %v298 = vunpack.c.l.b16 %v259
    %v299 = vunpack.c.l.b16 %v260
    %v300 = vunpack.c.l.b16 %v261
    %v301 = vunpack.c.l.b16 %v262
    %v302 = vunpack.c.l.b16 %v263
    %v303 = vunpack.c.l.b16 %v264
    %v304 = vunpack.c.l.b16 %v265
    %v305 = vunpack.c.l.b16 %v266
    %v306 = vunpack.c.l.b16 %v267
    %v307 = vunpack.c.l.b16 %v268
    %v308 = vunpack.c.l.b16 %v269
    %v309 = vunpack.c.l.b16 %v270
    %v310 = vunpack.c.l.b16 %v271
    %v311 = vunpack.c.l.b16 %v272
    %v312 = vunpack.c.l.b16 %v273
    %v313 = vpack.c.b16 %v298, %v297
    %v314 = vpack.c.b16 %v300, %v299
    %v315 = vpack.c.b16 %v302, %v301
    %v316 = vpack.c.b16 %v304, %v303
    %v317 = vpack.c.b16 %v306, %v305
    %v318 = vpack.c.b16 %v308, %v307
    %v319 = vpack.c.b16 %v310, %v309
    %v320 = vpack.c.b16 %v312, %v311
    %329 = vmatprep.subr.bf16.mxu0 0
    %330 = vmatpush1.bf16.msra.mxu0 %v313
    %331 = vmatprep.subr.bf16.mxu0 0
    %332 = vmatpush1.bf16.msra.mxu0 %v314
    %333 = vmatprep.subr.bf16.mxu0 0
    %334 = vmatpush1.bf16.msra.mxu0 %v315
    %335 = vmatprep.subr.bf16.mxu0 0
    %336 = vmatpush1.bf16.msra.mxu0 %v316
    %337 = vmatprep.subr.bf16.mxu0 0
    %338 = vmatpush1.bf16.msra.mxu0 %v317
    %339 = vmatprep.subr.bf16.mxu0 0
    %340 = vmatpush1.bf16.msra.mxu0 %v318
    %341 = vmatprep.subr.bf16.mxu0 0
    %342 = vmatpush1.bf16.msra.mxu0 %v319
    %343 = vmatprep.subr.bf16.mxu0 0
    %344 = vmatpush1.bf16.msra.mxu0 %v320
    %345 = vmatprep.subr.bf16.mxu0 0
    %346 = vmatpush1.bf16.msra.mxu0 0
    %347 = vmatprep.subr.bf16.mxu0 0
    %348 = vmatpush1.bf16.msra.mxu0 0
    %349 = vmatprep.subr.bf16.mxu0 0
    %350 = vmatpush1.bf16.msra.mxu0 0
    %351 = vmatprep.subr.bf16.mxu0 0
    %352 = vmatpush1.bf16.msra.mxu0 0
    %353 = vmatprep.subr.bf16.mxu0 0
    %354 = vmatpush1.bf16.msra.mxu0 0
    %355 = vmatprep.subr.bf16.mxu0 0
    %356 = vmatpush1.bf16.msra.mxu0 0
    %357 = vmatprep.subr.bf16.mxu0 0
    %358 = vmatpush1.bf16.msra.mxu0 0
    %359 = vmatprep.subr.bf16.mxu0 0
    %360 = vmatpush1.bf16.msra.mxu0 0
    %361 = vmatprep.mubr.bf16.mxu0 0
    %362 = vmatmul.mubr.bf16.gmra.mrb[0].mxu0 %v257
    %v363 = vpop.f32.mrb[0].mxu0
    %v364 = vadd.f32 %v279, %v363
    %v365 = vpop.f32.mrb[0].mxu0
    %v366 = vpop.f32.mrb[0].mxu0
    %v367 = vadd.f32 %v279, %v366
    %v368 = vpop.f32.mrb[0].mxu0
    %369 = vdwg.mxu0
    %v370 = vmin.f32 %v364, 30.0
    %v371 = vmin.f32 %v367, 30.0
    %v372 = vmul.f32 %v370, 1.442695
    %v373 = vpow.pop %v372
    %v374 = vmul.f32 %v371, 1.442695
    %v375 = vpow.pop %v374
    %v376 = vadd.f32 %v373, 1.0
    %v377 = vadd.f32 %v375, 1.0
    %v378 = vrcp.pop %v376
    %v379 = vrcp.pop %v377
    %v380 = vpack.c.bf16 %v379, %v378
    %v382 = vunpack.c.l.b16 %v380
    %v383 = vunpack.c.h.b16 %v380
    %v384 = vpack.c.b16 %v382, %v382
    %v385 = vpack.c.b16 %v383, %v383
    %388 = vst [vmem:[#allocation11] sm:$0xf] %v384
    %389 = vst [vmem:[#allocation11 + $0x4] sm:$0xf] %v385
    // Predicated region
    $region50: #{tpu_custom_call.1} parent=1 // pred_check
      _
    $region51: #{tpu_custom_call.1} parent=1 // pred_check_branch
      %391 = sbr.rel (0) target = $region53
    $region52: #{tpu_custom_call.1} parent=1 // pred_region
      %s393 = ssub.s32 128, 128
      %394 = vsyncadd [#allocation5], %s393
      %s395 = sshll.u32 [#allocation11], 4
      %s396 = int_to_ptr.vmem [resolvable:$true] %s395
      %401 = dma.vmem_to_hbm [thread:$0]  %s396, 128, %s7, [#allocation5], 64, 64, 4
    $region53: #{tpu_custom_call.1} parent=1 // pred_fallthru
      _
    // Predicated region
    $region54: #{tpu_custom_call.1} parent=1 // pred_check
      _
    $region55: #{tpu_custom_call.1} parent=1 // pred_check_branch
      %403 = sbr.rel (0) target = $region57
    $region56: #{tpu_custom_call.1} parent=1 // pred_region
      %404 = dma.done [#allocation5], 128
    $region57: #{tpu_custom_call.1} parent=1 // pred_fallthru
      _
    %405 = vsyncpa [#allocation4], 1
    %406 = vsyncpa [#allocation7], 1
    %407 = vsyncpa [#allocation10], 1
    %408 = vsyncpa [#allocation5], 1

// kernel: tpu_custom_call.1
$region0: #{tpu_custom_call.1}
  #allocation0 [shape = 'u32[]', space=smem, size = 0x4, offset = 0x4, fixed_abs, tag = 'smem constant byte address 0x4 - core index']
  #allocation1 [shape = 'u32[144,128]{1,0:T(1,128)}', space=vmem, size = 0x12000, scoped, tag = 'internal scratch']
  #allocation2 [shape = 'bf16[16,128]{1,0:T(16,128)(2,1)}', space=vmem, size = 0x1000, scoped, tag = 'scratch operand']
  %s0 = inlined_call_operand.hbm [shape: bf16[16,32], index: 0, kind: input, shape index: {}]
  %s1 = inlined_call_operand.hbm [shape: bf16[32,64], index: 1, kind: input, shape index: {}]
  %s2 = inlined_call_operand.vmem [shape: f32[1,64], index: 2, kind: input, shape index: {}]
  %s3 = inlined_call_operand.hbm [shape: bf16[64,128], index: 3, kind: input, shape index: {}]
  %s4 = inlined_call_operand.vmem [shape: f32[1,128], index: 4, kind: input, shape index: {}]
  %s5 = inlined_call_operand.hbm [shape: bf16[128,128], index: 5, kind: input, shape index: {}]
  %s6 = inlined_call_operand.vmem [shape: f32[1,128], index: 6, kind: input, shape index: {}]
  %s7 = inlined_call_operand.hbm [shape: bf16[16,128], index: 7, kind: output, shape index: {}]
  %s8 = sld [smem:[#allocation0]]
  $region58: #{tpu_custom_call.1} parent=0
    _
  %s10 = ssub.s32 1, %s8
  %s11 = scalar_select 0, %s10, %s8
  $region1: #{tpu_custom_call.1} parent=0
    #allocation3 [shape = 'u8[4096]{0}', space=vmem, size = 0x1000, scoped, tag = 'input window, operand 0, single buffered']
    #allocation4 [shape = 's32[1]{0}', space=sflag, size = 0x4, scoped, tag = 'scoped memory for tpu_custom_call.1']
    #allocation5 [shape = 's32[1]{0}', space=sflag, size = 0x4, scoped, tag = 'scoped memory for tpu_custom_call.1']
    #allocation6 [shape = 'u8[8192]{0}', space=vmem, size = 0x2000, scoped, tag = 'input window, operand 1, single buffered']
    #allocation7 [shape = 's32[1]{0}', space=sflag, size = 0x4, scoped, tag = 'scoped memory for tpu_custom_call.1']
    #allocation8 [shape = 'u8[16384]{0}', space=vmem, size = 0x4000, scoped, tag = 'input window, operand 3, single buffered']
    #allocation9 [shape = 'u8[32768]{0}', space=vmem, size = 0x8000, scoped, tag = 'input window, operand 5, single buffered']
    #allocation10 [shape = 's32[1]{0}', space=sflag, size = 0x4, scoped, tag = 'scoped memory for tpu_custom_call.1']
    #allocation11 [shape = 'u8[4096]{0}', space=vmem, size = 0x1000, scoped, tag = 'output window, operand 0, single buffered']
    %12 = vsyncpa [#allocation4], 0
    %13 = vsyncpa [#allocation7], 0
    %14 = vsyncpa [#allocation10], 0
    %15 = vsyncpa [#allocation5], 0
    // Predicated region
    $region2: #{tpu_custom_call.1} parent=1 // pred_check
      _
    $region3: #{tpu_custom_call.1} parent=1 // pred_check_branch
      %17 = sbr.rel (0) target = $region5
    $region4: #{tpu_custom_call.1} parent=1 // pred_region
      %s19 = ssub.s32 128, 128
      %20 = vsyncadd [#allocation4], %s19
      %s21 = sshll.u32 [#allocation3], 4
      %s22 = int_to_ptr.vmem [resolvable:$true] %s21
      %27 = dma.hbm_to_vmem [thread:$0]  %s0, 128, %s22, [#allocation4], 64, 64, 4
    $region5: #{tpu_custom_call.1} parent=1 // pred_fallthru
      _
    // Predicated region
    $region6: #{tpu_custom_call.1} parent=1 // pred_check
      _
    $region7: #{tpu_custom_call.1} parent=1 // pred_check_branch
      %29 = sbr.rel (0) target = $region9
    $region8: #{tpu_custom_call.1} parent=1 // pred_region
      %s31 = ssub.s32 256, 256
      %32 = vsyncadd [#allocation7], %s31
      %s33 = sshll.u32 [#allocation6], 4
      %s34 = int_to_ptr.vmem [resolvable:$true] %s33
      %39 = dma.hbm_to_vmem [thread:$0]  %s1, 256, %s34, [#allocation7], 64, 64, 4
    $region9: #{tpu_custom_call.1} parent=1 // pred_fallthru
      _
    // Predicated region
    $region10: #{tpu_custom_call.1} parent=1 // pred_check
      _
    $region11: #{tpu_custom_call.1} parent=1 // pred_check_branch
      %41 = sbr.rel (0) target = $region13
    $region12: #{tpu_custom_call.1} parent=1 // pred_region
      _
    $region13: #{tpu_custom_call.1} parent=1 // pred_fallthru
      _
    // Predicated region
    $region14: #{tpu_custom_call.1} parent=1 // pred_check
      _
    $region15: #{tpu_custom_call.1} parent=1 // pred_check_branch
      %43 = sbr.rel (0) target = $region17
    $region16: #{tpu_custom_call.1} parent=1 // pred_region
      %s45 = ssub.s32 512, 512
      %46 = vsyncadd [#allocation7], %s45
      %s47 = sshll.u32 [#allocation8], 4
      %s48 = int_to_ptr.vmem [resolvable:$true] %s47
      %53 = dma.hbm_to_vmem [thread:$0]  %s3, 512, %s48, [#allocation7], 64, 64, 4
    $region17: #{tpu_custom_call.1} parent=1 // pred_fallthru
      _
    // Predicated region
    $region18: #{tpu_custom_call.1} parent=1 // pred_check
      _
    $region19: #{tpu_custom_call.1} parent=1 // pred_check_branch
      %55 = sbr.rel (0) target = $region21
    $region20: #{tpu_custom_call.1} parent=1 // pred_region
      _
    $region21: #{tpu_custom_call.1} parent=1 // pred_fallthru
      _
    // Predicated region
    $region22: #{tpu_custom_call.1} parent=1 // pred_check
      _
    $region23: #{tpu_custom_call.1} parent=1 // pred_check_branch
      %57 = sbr.rel (0) target = $region25
    $region24: #{tpu_custom_call.1} parent=1 // pred_region
      %s59 = ssub.s32 1024, 1024
      %60 = vsyncadd [#allocation10], %s59
      %s61 = sshll.u32 [#allocation9], 4
      %s62 = int_to_ptr.vmem [resolvable:$true] %s61
      %67 = dma.hbm_to_vmem [thread:$0]  %s5, 1024, %s62, [#allocation10], 64, 64, 4
    $region25: #{tpu_custom_call.1} parent=1 // pred_fallthru
      _
    // Predicated region
    $region26: #{tpu_custom_call.1} parent=1 // pred_check
      _
    $region27: #{tpu_custom_call.1} parent=1 // pred_check_branch
      %69 = sbr.rel (0) target = $region29
    $region28: #{tpu_custom_call.1} parent=1 // pred_region
      _
    $region29: #{tpu_custom_call.1} parent=1 // pred_fallthru
      _
    // Predicated region
    $region30: #{tpu_custom_call.1} parent=1 // pred_check
      _
    $region31: #{tpu_custom_call.1} parent=1 // pred_check_branch
      %71 = sbr.rel (0) target = $region33
    $region32: #{tpu_custom_call.1} parent=1 // pred_region
      %72 = dma.done [#allocation4], 128
    $region33: #{tpu_custom_call.1} parent=1 // pred_fallthru
      _
    // Predicated region
    $region34: #{tpu_custom_call.1} parent=1 // pred_check
      _
    $region35: #{tpu_custom_call.1} parent=1 // pred_check_branch
      %74 = sbr.rel (0) target = $region37
    $region36: #{tpu_custom_call.1} parent=1 // pred_region
      %75 = dma.done [#allocation7], 256
    $region37: #{tpu_custom_call.1} parent=1 // pred_fallthru
      _
    // Predicated region
    $region38: #{tpu_custom_call.1} parent=1 // pred_check
      _
    $region39: #{tpu_custom_call.1} parent=1 // pred_check_branch
      %77 = sbr.rel (0) target = $region41
    $region40: #{tpu_custom_call.1} parent=1 // pred_region
      %78 = dma.done [#allocation7], 512
    $region41: #{tpu_custom_call.1} parent=1 // pred_fallthru
      _
    // Predicated region
    $region42: #{tpu_custom_call.1} parent=1 // pred_check
      _
    $region43: #{tpu_custom_call.1} parent=1 // pred_check_branch
      %80 = sbr.rel (0) target = $region45
    $region44: #{tpu_custom_call.1} parent=1 // pred_region
      %81 = dma.done [#allocation10], 1024
    $region45: #{tpu_custom_call.1} parent=1 // pred_fallthru
      _
    %p83 = scmp.eq.s32.totalorder 0, 0
    // Predicated region
    $region46: #{tpu_custom_call.1} parent=1 // pred_check
      %p84 = pneg %p83
    $region47: #{tpu_custom_call.1} parent=1 // pred_check_branch
      %86 = sbr.rel (%p84) target = $region49
    $region48: #{tpu_custom_call.1} parent=1 // pred_region
      %v87 = vld [vmem:[#allocation3] sm:$0xf]
      %v88 = vld [vmem:[#allocation3 + $0x4] sm:$0xf]
      %v89 = vld [vmem:[#allocation6] sm:$0xf]
      %v90 = vld [vmem:[#allocation6 + $0x4] sm:$0xf]
      %v91 = vld [vmem:[#allocation6 + $0x8] sm:$0xf]
      %v92 = vld [vmem:[#allocation6 + $0xc] sm:$0xf]
      %v93 = vld [vmem:[%s2] sm:$0x1]
      %v95 = vlaneseq
      %v96 = vshrl.u32 %v95, 7
      %v97 = vsub.s32 0, %v96
      %v98 = vrot.slane %v93, %v97
      %v102 = vunpack.c.l.b16 %v87
      %v103 = vunpack.c.l.b16 %v88
      %v104 = vpack.c.b16 %v103, %v102
      %v109 = vunpack.c.l.b16 %v89
      %v110 = vunpack.c.l.b16 %v90
      %v111 = vunpack.c.l.b16 %v91
      %v112 = vunpack.c.l.b16 %v92
      %v113 = vpack.c.b16 %v110, %v109
      %v114 = vpack.c.b16 %v112, %v111
      %vm117 = vcmask 261120
      %v119 = vsel %vm117, %v104, 0
      %121 = vmatprep.subr.bf16.mxu0 0
      %122 = vmatpush1.bf16.msra.mxu0 %v113
      %123 = vmatprep.subr.bf16.mxu0 0
      %124 = vmatpush1.bf16.msra.mxu0 %v114
      %125 = vmatprep.subr.bf16.mxu0 0
      %126 = vmatpush1.bf16.msra.mxu0 0
      %127 = vmatprep.subr.bf16.mxu0 0
      %128 = vmatpush1.bf16.msra.mxu0 0
      %129 = vmatprep.subr.bf16.mxu0 0
      %130 = vmatpush1.bf16.msra.mxu0 0
      %131 = vmatprep.subr.bf16.mxu0 0
      %132 = vmatpush1.bf16.msra.mxu0 0
      %133 = vmatprep.subr.bf16.mxu0 0
      %134 = vmatpush1.bf16.msra.mxu0 0
      %135 = vmatprep.subr.bf16.mxu0 0
      %136 = vmatpush1.bf16.msra.mxu0 0
      %137 = vmatprep.subr.bf16.mxu0 0
      %138 = vmatpush1.bf16.msra.mxu0 0
      %139 = vmatprep.subr.bf16.mxu0 0
      %140 = vmatpush1.bf16.msra.mxu0 0
      %141 = vmatprep.subr.bf16.mxu0 0
      %142 = vmatpush1.bf16.msra.mxu0 0
      %143 = vmatprep.subr.bf16.mxu0 0
      %144 = vmatpush1.bf16.msra.mxu0 0
      %145 = vmatprep.subr.bf16.mxu0 0
      %146 = vmatpush1.bf16.msra.mxu0 0
      %147 = vmatprep.subr.bf16.mxu0 0
      %148 = vmatpush1.bf16.msra.mxu0 0
      %149 = vmatprep.subr.bf16.mxu0 0
      %150 = vmatpush1.bf16.msra.mxu0 0
      %151 = vmatprep.subr.bf16.mxu0 0
      %152 = vmatpush1.bf16.msra.mxu0 0
      %153 = vmatprep.mubr.bf16.mxu0 0
      %154 = vmatmul.mubr.bf16.gmra.mrb[0].mxu0 %v119
      %v155 = vpop.f32.mrb[0].mxu0
      %v156 = vadd.f32 %v98, %v155
      %v157 = vpop.f32.mrb[0].mxu0
      %v158 = vpop.f32.mrb[0].mxu0
      %v159 = vadd.f32 %v98, %v158
      %v160 = vpop.f32.mrb[0].mxu0
      %161 = vdwg.mxu0
      %v162 = vmul.f32 %v156, 0.01
      %v163 = vmul.f32 %v159, 0.01
      %v164 = vmax.f32 %v156, %v162
      %v165 = vmax.f32 %v159, %v163
      %v166 = vpack.c.bf16 %v165, %v164
      %v167 = vld [vmem:[#allocation8] sm:$0xf]
      %v168 = vld [vmem:[#allocation8 + $0x4] sm:$0xf]
      %v169 = vld [vmem:[#allocation8 + $0x8] sm:$0xf]
      %v170 = vld [vmem:[#allocation8 + $0xc] sm:$0xf]
      %v171 = vld [vmem:[#allocation8 + $0x10] sm:$0xf]
      %v172 = vld [vmem:[#allocation8 + $0x14] sm:$0xf]
      %v173 = vld [vmem:[#allocation8 + $0x18] sm:$0xf]
      %v174 = vld [vmem:[#allocation8 + $0x1c] sm:$0xf]
      %v175 = vld [vmem:[%s4] sm:$0x1]
      %v177 = vlaneseq
      %v178 = vshrl.u32 %v177, 7
      %v179 = vsub.s32 0, %v178
      %v180 = vrot.slane %v175, %v179
      %v190 = vunpack.c.l.b16 %v167
      %v191 = vunpack.c.l.b16 %v168
      %v192 = vunpack.c.l.b16 %v169
      %v193 = vunpack.c.l.b16 %v170
      %v194 = vunpack.c.l.b16 %v171
      %v195 = vunpack.c.l.b16 %v172
      %v196 = vunpack.c.l.b16 %v173
      %v197 = vunpack.c.l.b16 %v174
      %v198 = vpack.c.b16 %v191, %v190
      %v199 = vpack.c.b16 %v193, %v192
      %v200 = vpack.c.b16 %v195, %v194
      %v201 = vpack.c.b16 %v197, %v196
      %vm206 = vcmask 523264
      %v208 = vsel %vm206, %v166, 0
      %210 = vmatprep.subr.bf16.mxu0 0
      %211 = vmatpush1.bf16.msra.mxu0 %v198
      %212 = vmatprep.subr.bf16.mxu0 0
      %213 = vmatpush1.bf16.msra.mxu0 %v199
      %214 = vmatprep.subr.bf16.mxu0 0
      %215 = vmatpush1.bf16.msra.mxu0 %v200
      %216 = vmatprep.subr.bf16.mxu0 0
      %217 = vmatpush1.bf16.msra.mxu0 %v201
      %218 = vmatprep.subr.bf16.mxu0 0
      %219 = vmatpush1.bf16.msra.mxu0 0
      %220 = vmatprep.subr.bf16.mxu0 0
      %221 = vmatpush1.bf16.msra.mxu0 0
      %222 = vmatprep.subr.bf16.mxu0 0
      %223 = vmatpush1.bf16.msra.mxu0 0
      %224 = vmatprep.subr.bf16.mxu0 0
      %225 = vmatpush1.bf16.msra.mxu0 0
      %226 = vmatprep.subr.bf16.mxu0 0
      %227 = vmatpush1.bf16.msra.mxu0 0
      %228 = vmatprep.subr.bf16.mxu0 0
      %229 = vmatpush1.bf16.msra.mxu0 0
      %230 = vmatprep.subr.bf16.mxu0 0
      %231 = vmatpush1.bf16.msra.mxu0 0
      %232 = vmatprep.subr.bf16.mxu0 0
      %233 = vmatpush1.bf16.msra.mxu0 0
      %234 = vmatprep.subr.bf16.mxu0 0
      %235 = vmatpush1.bf16.msra.mxu0 0
      %236 = vmatprep.subr.bf16.mxu0 0
      %237 = vmatpush1.bf16.msra.mxu0 0
      %238 = vmatprep.subr.bf16.mxu0 0
      %239 = vmatpush1.bf16.msra.mxu0 0
      %240 = vmatprep.subr.bf16.mxu0 0
      %241 = vmatpush1.bf16.msra.mxu0 0
      %242 = vmatprep.mubr.bf16.mxu0 0
      %243 = vmatmul.mubr.bf16.gmra.mrb[0].mxu0 %v208
      %v244 = vpop.f32.mrb[0].mxu0
      %v245 = vadd.f32 %v180, %v244
      %v246 = vpop.f32.mrb[0].mxu0
      %v247 = vpop.f32.mrb[0].mxu0
      %v248 = vadd.f32 %v180, %v247
      %v249 = vpop.f32.mrb[0].mxu0
      %250 = vdwg.mxu0
      %v251 = vmul.f32 %v245, 0.01
      %v252 = vmul.f32 %v248, 0.01
      %v253 = vmax.f32 %v245, %v251
      %v254 = vmax.f32 %v248, %v252
      %v255 = vpack.c.bf16 %v254, %v253
      %256 = vst [vmem:[#allocation2] sm:$0xff] %v255
    $region49: #{tpu_custom_call.1} parent=1 // pred_fallthru
      _
    %v257 = vld [vmem:[#allocation2] sm:$0xff]
    %v258 = vld [vmem:[#allocation9] sm:$0xf]
    %v259 = vld [vmem:[#allocation9 + $0x4] sm:$0xf]
    %v260 = vld [vmem:[#allocation9 + $0x8] sm:$0xf]
    %v261 = vld [vmem:[#allocation9 + $0xc] sm:$0xf]
    %v262 = vld [vmem:[#allocation9 + $0x10] sm:$0xf]
    %v263 = vld [vmem:[#allocation9 + $0x14] sm:$0xf]
    %v264 = vld [vmem:[#allocation9 + $0x18] sm:$0xf]
    %v265 = vld [vmem:[#allocation9 + $0x1c] sm:$0xf]
    %v266 = vld [vmem:[#allocation9 + $0x20] sm:$0xf]
    %v267 = vld [vmem:[#allocation9 + $0x24] sm:$0xf]
    %v268 = vld [vmem:[#allocation9 + $0x28] sm:$0xf]
    %v269 = vld [vmem:[#allocation9 + $0x2c] sm:$0xf]
    %v270 = vld [vmem:[#allocation9 + $0x30] sm:$0xf]
    %v271 = vld [vmem:[#allocation9 + $0x34] sm:$0xf]
    %v272 = vld [vmem:[#allocation9 + $0x38] sm:$0xf]
    %v273 = vld [vmem:[#allocation9 + $0x3c] sm:$0xf]
    %v274 = vld [vmem:[%s6] sm:$0x1]
    %v276 = vlaneseq
    %v277 = vshrl.u32 %v276, 7
    %v278 = vsub.s32 0, %v277
    %v279 = vrot.slane %v274, %v278
    %v297 = vunpack.c.l.b16 %v258
    %v298 = vunpack.c.l.b16 %v259
    %v299 = vunpack.c.l.b16 %v260
    %v300 = vunpack.c.l.b16 %v261
    %v301 = vunpack.c.l.b16 %v262
    %v302 = vunpack.c.l.b16 %v263
    %v303 = vunpack.c.l.b16 %v264
    %v304 = vunpack.c.l.b16 %v265
    %v305 = vunpack.c.l.b16 %v266
    %v306 = vunpack.c.l.b16 %v267
    %v307 = vunpack.c.l.b16 %v268
    %v308 = vunpack.c.l.b16 %v269
    %v309 = vunpack.c.l.b16 %v270
    %v310 = vunpack.c.l.b16 %v271
    %v311 = vunpack.c.l.b16 %v272
    %v312 = vunpack.c.l.b16 %v273
    %v313 = vpack.c.b16 %v298, %v297
    %v314 = vpack.c.b16 %v300, %v299
    %v315 = vpack.c.b16 %v302, %v301
    %v316 = vpack.c.b16 %v304, %v303
    %v317 = vpack.c.b16 %v306, %v305
    %v318 = vpack.c.b16 %v308, %v307
    %v319 = vpack.c.b16 %v310, %v309
    %v320 = vpack.c.b16 %v312, %v311
    %329 = vmatprep.subr.bf16.mxu0 0
    %330 = vmatpush1.bf16.msra.mxu0 %v313
    %331 = vmatprep.subr.bf16.mxu0 0
    %332 = vmatpush1.bf16.msra.mxu0 %v314
    %333 = vmatprep.subr.bf16.mxu0 0
    %334 = vmatpush1.bf16.msra.mxu0 %v315
    %335 = vmatprep.subr.bf16.mxu0 0
    %336 = vmatpush1.bf16.msra.mxu0 %v316
    %337 = vmatprep.subr.bf16.mxu0 0
    %338 = vmatpush1.bf16.msra.mxu0 %v317
    %339 = vmatprep.subr.bf16.mxu0 0
    %340 = vmatpush1.bf16.msra.mxu0 %v318
    %341 = vmatprep.subr.bf16.mxu0 0
    %342 = vmatpush1.bf16.msra.mxu0 %v319
    %343 = vmatprep.subr.bf16.mxu0 0
    %344 = vmatpush1.bf16.msra.mxu0 %v320
    %345 = vmatprep.subr.bf16.mxu0 0
    %346 = vmatpush1.bf16.msra.mxu0 0
    %347 = vmatprep.subr.bf16.mxu0 0
    %348 = vmatpush1.bf16.msra.mxu0 0
    %349 = vmatprep.subr.bf16.mxu0 0
    %350 = vmatpush1.bf16.msra.mxu0 0
    %351 = vmatprep.subr.bf16.mxu0 0
    %352 = vmatpush1.bf16.msra.mxu0 0
    %353 = vmatprep.subr.bf16.mxu0 0
    %354 = vmatpush1.bf16.msra.mxu0 0
    %355 = vmatprep.subr.bf16.mxu0 0
    %356 = vmatpush1.bf16.msra.mxu0 0
    %357 = vmatprep.subr.bf16.mxu0 0
    %358 = vmatpush1.bf16.msra.mxu0 0
    %359 = vmatprep.subr.bf16.mxu0 0
    %360 = vmatpush1.bf16.msra.mxu0 0
    %361 = vmatprep.mubr.bf16.mxu0 0
    %362 = vmatmul.mubr.bf16.gmra.mrb[0].mxu0 %v257
    %v363 = vpop.f32.mrb[0].mxu0
    %v364 = vadd.f32 %v279, %v363
    %v365 = vpop.f32.mrb[0].mxu0
    %v366 = vpop.f32.mrb[0].mxu0
    %v367 = vadd.f32 %v279, %v366
    %v368 = vpop.f32.mrb[0].mxu0
    %369 = vdwg.mxu0
    %v370 = vmin.f32 %v364, 30.0
    %v371 = vmin.f32 %v367, 30.0
    %v372 = vmul.f32 %v370, 1.442695
    %v373 = vpow.pop %v372
    %v374 = vmul.f32 %v371, 1.442695
    %v375 = vpow.pop %v374
    %v376 = vadd.f32 %v373, 1.0
    %v377 = vadd.f32 %v375, 1.0
    %v378 = vrcp.pop %v376
    %v379 = vrcp.pop %v377
    %v380 = vpack.c.bf16 %v379, %v378
    %v382 = vunpack.c.l.b16 %v380
    %v383 = vunpack.c.h.b16 %v380
    %v384 = vpack.c.b16 %v382, %v382
    %v385 = vpack.c.b16 %v383, %v383
    %388 = vst [vmem:[#allocation11] sm:$0xf] %v384
    %389 = vst [vmem:[#allocation11 + $0x4] sm:$0xf] %v385
    // Predicated region
    $region50: #{tpu_custom_call.1} parent=1 // pred_check
      _
    $region51: #{tpu_custom_call.1} parent=1 // pred_check_branch
      %391 = sbr.rel (0) target = $region53
    $region52: #{tpu_custom_call.1} parent=1 // pred_region
      %s393 = ssub.s32 128, 128
      %394 = vsyncadd [#allocation5], %s393
      %s395 = sshll.u32 [#allocation11], 4
      %s396 = int_to_ptr.vmem [resolvable:$true] %s395
      %401 = dma.vmem_to_hbm [thread:$0]  %s396, 128, %s7, [#allocation5], 64, 64, 4
    $region53: #{tpu_custom_call.1} parent=1 // pred_fallthru
      _
    // Predicated region
    $region54: #{tpu_custom_call.1} parent=1 // pred_check
      _
    $region55: #{tpu_custom_call.1} parent=1 // pred_check_branch
      %403 = sbr.rel (0) target = $region57
    $region56: #{tpu_custom_call.1} parent=1 // pred_region
      %404 = dma.done [#allocation5], 128
    $region57: #{tpu_custom_call.1} parent=1 // pred_fallthru
      _
    %405 = vsyncpa [#allocation4], 1
    %406 = vsyncpa [#allocation7], 1
    %407 = vsyncpa [#allocation10], 1
    %408 = vsyncpa [#allocation5], 1

</llo_original>
